<compile_context>
chip_gen: v7x
topology: tpu7x:2x2x1
jax: 0.10.0
libtpu: 0.0.40
codegen_flags: <defaults>
</compile_context>

<pallas_src>
import functools

import jax
import jax.numpy as jnp
from jax import lax
from jax.experimental import pallas as pl
from jax.experimental.pallas import tpu as pltpu


def _round_up(x: int, m: int) -> int:
    return (x + m - 1) // m * m


def _vmem_capacity_bytes() -> int:
    try:
        return int(pltpu.get_tpu_info().vmem_capacity_bytes)
    except Exception:
        # Safe lower bound across v5e / v6e / v7x.
        return 64 * 1024 * 1024


# ---------------------------------------------------------------------------
# Fused path: output row-slab (tm, v_pad) resident across the vocab axis.
# ---------------------------------------------------------------------------
def _fused_kernel(x_ref, w_ref, b_ref, o_ref, m_ref, l_ref, *, nv, tn):
    # x_ref: (tm, d_model)   w_ref: (d_model, tn)   b_ref: (1, v_pad) resident
    # o_ref: (tm, v_pad) resident row-slab   m_ref/l_ref: (tm, 1) f32 scratch
    j = pl.program_id(1)
    off = pl.multiple_of(j * tn, 128)

    @pl.when(j == 0)
    def _init():
        m_ref[...] = jnp.full_like(m_ref, -jnp.inf)
        l_ref[...] = jnp.zeros_like(l_ref)

    tile = (
        jnp.dot(x_ref[...], w_ref[...], preferred_element_type=jnp.float32)
        + b_ref[:, pl.ds(off, tn)]
    )

    # Raw (biased) logits go straight into the output slab -> store traffic is
    # spread over all nv grid steps rather than dumped in the epilogue.
    o_ref[:, pl.ds(off, tn)] = tile.astype(o_ref.dtype)

    # Online logsumexp (f32 math).
    m_prev = m_ref[...]
    m_new = jnp.maximum(m_prev, jnp.max(tile, axis=-1, keepdims=True))
    l_ref[...] = l_ref[...] * jnp.exp(m_prev - m_new) + jnp.sum(
        jnp.exp(tile - m_new), axis=-1, keepdims=True
    )
    m_ref[...] = m_new

    @pl.when(j == nv - 1)
    def _finalize():
        lse = m_ref[...] + jnp.log(l_ref[...])

        def body(jj, carry):
            o = pl.multiple_of(jj * tn, 128)
            blk = o_ref[:, pl.ds(o, tn)].astype(jnp.float32)
            o_ref[:, pl.ds(o, tn)] = (blk - lse).astype(o_ref.dtype)
            return carry

        lax.fori_loop(0, nv, body, 0, unroll=2 if nv >= 2 else 1)


# ---------------------------------------------------------------------------
# Split path (large vocab): pass 1 = unnormalized logits + lse, pass 2 = sub.
# ---------------------------------------------------------------------------
def _split_matmul_kernel(x_ref, w_ref, b_ref, logits_ref, lse_ref,
                         m_ref, l_ref, *, nv, tn):
    j = pl.program_id(1)
    off = pl.multiple_of(j * tn, 128)

    @pl.when(j == 0)
    def _init():
        m_ref[...] = jnp.full_like(m_ref, -jnp.inf)
        l_ref[...] = jnp.zeros_like(l_ref)

    tile = (
        jnp.dot(x_ref[...], w_ref[...], preferred_element_type=jnp.float32)
        + b_ref[:, pl.ds(off, tn)]
    )
    logits_ref[...] = tile.astype(logits_ref.dtype)

    m_prev = m_ref[...]
    m_new = jnp.maximum(m_prev, jnp.max(tile, axis=-1, keepdims=True))
    l_ref[...] = l_ref[...] * jnp.exp(m_prev - m_new) + jnp.sum(
        jnp.exp(tile - m_new), axis=-1, keepdims=True
    )
    m_ref[...] = m_new

    @pl.when(j == nv - 1)
    def _fin():
        lse_ref[...] = m_ref[...] + jnp.log(l_ref[...])


def _normalize_kernel(logits_ref, lse_ref, o_ref):
    o_ref[...] = (
        logits_ref[...].astype(jnp.float32) - lse_ref[...]
    ).astype(o_ref.dtype)


# ---------------------------------------------------------------------------
# Wrapper
# ---------------------------------------------------------------------------
@functools.partial(
    jax.jit,
    static_argnames=("tm", "tn", "compute_dtype", "out_dtype", "two_pass"),
)
def generator_forward(x, w, b, *, tm=512, tn=512, compute_dtype=None,
                      out_dtype=None, two_pass=None):
    """log_softmax(x @ w + b, axis=-1).

    x: [B, T, d_model]; w: [d_model, vocab] (PyTorch weight transposed);
    b: [vocab].  Returns [B, T, vocab] in `out_dtype` (default x.dtype).
    `compute_dtype=jnp.bfloat16` feeds the MXU bf16 operands (f32 accumulate,
    f32 softmax math).  `two_pass` forces the split (large-vocab) path.
    """
    B, T, d_model = x.shape
    d_model_w, vocab = w.shape
    assert d_model == d_model_w, "weight must be [d_model, vocab]"
    if out_dtype is None:
        out_dtype = x.dtype
    if compute_dtype is None:
        compute_dtype = x.dtype

    M = B * T
    x2d = x.reshape(M, d_model)

    # ---- tile sizes ---------------------------------------------------------
    c_bytes = jnp.dtype(compute_dtype).itemsize
    o_bytes = jnp.dtype(out_dtype).itemsize
    # Packed dtypes want 16 (bf16) / 32 (fp8, int8) row granularity.
    row_align = 8 if c_bytes >= 4 else (16 if c_bytes == 2 else 32)

    tm_eff = min(_round_up(tm, row_align), _round_up(M, row_align))
    tn_eff = min(_round_up(tn, 128), _round_up(vocab, 128))
    m_pad = _round_up(M, tm_eff)
    v_pad = _round_up(vocab, tn_eff)
    nm = m_pad // tm_eff
    nv = v_pad // tn_eff

    # ---- padding: rows with zeros (sliced off), extra vocab cols masked -----
    if m_pad != M:
        x2d = jnp.pad(x2d, ((0, m_pad - M), (0, 0)))
    w_p, b_p = w, b
    if v_pad != vocab:
        w_p = jnp.pad(w, ((0, 0), (0, v_pad - vocab)))
        # Huge negative bias -> padded columns contribute 0 to the logsumexp.
        b_p = jnp.pad(b, (0, v_pad - vocab), constant_values=-1e30)

    x2d = x2d.astype(compute_dtype)
    w_p = w_p.astype(compute_dtype)
    b2d = b_p.reshape(1, v_pad).astype(jnp.float32)   # f32 bias, resident

    # ---- VMEM budget / path selection ---------------------------------------
    vmem_cap = _vmem_capacity_bytes()

    fused_footprint = (
        2 * tm_eff * d_model * c_bytes      # x tile (double buffered)
        + 2 * d_model * tn_eff * c_bytes    # w tile
        + 2 * v_pad * 4                     # resident f32 bias
        + 2 * tm_eff * v_pad * o_bytes      # output row-slab
        + 4 * tm_eff * 4                    # m / l accumulators
    )
    if two_pass is None:
        two_pass = fused_footprint > int(0.5 * vmem_cap)

    cost = pl.CostEstimate(
        flops=2 * m_pad * d_model * v_pad,
        transcendentals=m_pad * v_pad,
        bytes_accessed=(
            x2d.size * c_bytes
            + nm * w_p.size * c_bytes
            + b2d.size * 4
            + (1 if not two_pass else 3) * m_pad * v_pad * o_bytes
        ),
    )

    def _limit(footprint):
        return int(min(0.9 * vmem_cap,
                       max(32 * 1024 * 1024, 1.5 * footprint)))

    if not two_pass:
        # -------- fused: (tm, v_pad) output slab resident across vocab -------
        kernel = functools.partial(_fused_kernel, nv=nv, tn=tn_eff)
        out2d = pl.pallas_call(
            kernel,
            out_shape=jax.ShapeDtypeStruct((m_pad, v_pad), out_dtype),
            grid_spec=pltpu.PrefetchScalarGridSpec(
                num_scalar_prefetch=0,
                grid=(nm, nv),
                in_specs=[
                    pl.BlockSpec((tm_eff, d_model), lambda i, j: (i, 0)),
                    pl.BlockSpec((d_model, tn_eff), lambda i, j: (0, j)),
                    pl.BlockSpec((1, v_pad), lambda i, j: (0, 0)),
                ],
                out_specs=pl.BlockSpec((tm_eff, v_pad), lambda i, j: (i, 0)),
                scratch_shapes=[
                    pltpu.VMEM((tm_eff, 1), jnp.float32),
                    pltpu.VMEM((tm_eff, 1), jnp.float32),
                ],
            ),
            compiler_params=pltpu.CompilerParams(
                dimension_semantics=("parallel", "arbitrary"),
                vmem_limit_bytes=_limit(fused_footprint),
            ),
            cost_estimate=cost,
        )(x2d, w_p, b2d)
    else:
        # -------- split: no O(tm * vocab) residency ---------------------------
        inter_dtype = out_dtype
        i_bytes = jnp.dtype(inter_dtype).itemsize

        pass1_footprint = (
            2 * tm_eff * d_model * c_bytes
            + 2 * d_model * tn_eff * c_bytes
            + 2 * v_pad * 4
            + 2 * tm_eff * tn_eff * i_bytes
            + 2 * tm_eff * 4
            + 4 * tm_eff * 4
        )
        kernel1 = functools.partial(_split_matmul_kernel, nv=nv, tn=tn_eff)
        logits2d, lse2d = pl.pallas_call(
            kernel1,
            out_shape=(
                jax.ShapeDtypeStruct((m_pad, v_pad), inter_dtype),
                jax.ShapeDtypeStruct((m_pad, 1), jnp.float32),
            ),
            grid_spec=pltpu.PrefetchScalarGridSpec(
                num_scalar_prefetch=0,
                grid=(nm, nv),
                in_specs=[
                    pl.BlockSpec((tm_eff, d_model), lambda i, j: (i, 0)),
                    pl.BlockSpec((d_model, tn_eff), lambda i, j: (0, j)),
                    pl.BlockSpec((1, v_pad), lambda i, j: (0, 0)),
                ],
                out_specs=[
                    pl.BlockSpec((tm_eff, tn_eff), lambda i, j: (i, j)),
                    pl.BlockSpec((tm_eff, 1), lambda i, j: (i, 0)),
                ],
                scratch_shapes=[
                    pltpu.VMEM((tm_eff, 1), jnp.float32),
                    pltpu.VMEM((tm_eff, 1), jnp.float32),
                ],
            ),
            compiler_params=pltpu.CompilerParams(
                dimension_semantics=("parallel", "arbitrary"),
                vmem_limit_bytes=_limit(pass1_footprint),
            ),
            cost_estimate=cost,
        )(x2d, w_p, b2d)

        pass2_footprint = (
            2 * tm_eff * tn_eff * i_bytes
            + 2 * tm_eff * 4
            + 2 * tm_eff * tn_eff * o_bytes
        )
        out2d = pl.pallas_call(
            _normalize_kernel,
            out_shape=jax.ShapeDtypeStruct((m_pad, v_pad), out_dtype),
            grid_spec=pltpu.PrefetchScalarGridSpec(
                num_scalar_prefetch=0,
                grid=(nm, nv),
                in_specs=[
                    pl.BlockSpec((tm_eff, tn_eff), lambda i, j: (i, j)),
                    pl.BlockSpec((tm_eff, 1), lambda i, j: (i, 0)),
                ],
                out_specs=pl.BlockSpec((tm_eff, tn_eff), lambda i, j: (i, j)),
            ),
            compiler_params=pltpu.CompilerParams(
                dimension_semantics=("parallel", "parallel"),
                vmem_limit_bytes=_limit(pass2_footprint),
            ),
        )(logits2d, lse2d)

    return out2d[:M, :vocab].reshape(B, T, vocab)


if __name__ == "__main__":
    # Small shapes consistent with the module: d_model=32, vocab=128, B=2, T=8.
    B, T, d_model, vocab = 2, 8, 32, 128

    key = jax.random.PRNGKey(0)
    kx, kw, kb = jax.random.split(key, 3)

    # nn.Linear-style uniform(-1/sqrt(d), 1/sqrt(d)) init; weight kept
    # transposed as (d_model, vocab).
    bound = 1.0 / (d_model ** 0.5)
    w = jax.random.uniform(kw, (d_model, vocab), jnp.float32, -bound, bound)
    b = jax.random.uniform(kb, (vocab,), jnp.float32, -bound, bound)
    x = jax.random.normal(kx, (B, T, d_model), jnp.float32)

    ref = jax.nn.log_softmax(jnp.einsum("btd,dv->btv", x, w) + b, axis=-1)

    # 1) f32, fused (small-vocab) path.
    out = generator_forward(x, w, b)
    jax.block_until_ready(out)
    assert out.shape == (B, T, vocab)
    assert jnp.allclose(out, ref, atol=1e-5, rtol=1e-5)

    # 2) Forced two-pass (large-vocab) path on the same small problem.
    out_tp = generator_forward(x, w, b, two_pass=True)
    jax.block_until_ready(out_tp)
    assert jnp.allclose(out_tp, ref, atol=1e-5, rtol=1e-5)

    # 3) Ragged shapes: B*T not a multiple of the row tile and vocab not a
    #    multiple of 128 (exercises the row- and vocab-padding paths).
    B2, T2, vocab2 = 2, 5, 96
    x2 = jax.random.normal(kx, (B2, T2, d_model), jnp.float32)
    w2, b2 = w[:, :vocab2], b[:vocab2]
    out2 = generator_forward(x2, w2, b2)
    jax.block_until_ready(out2)
    ref2 = jax.nn.log_softmax(jnp.einsum("btd,dv->btv", x2, w2) + b2, axis=-1)
    assert out2.shape == (B2, T2, vocab2)
    assert jnp.allclose(out2, ref2, atol=1e-5, rtol=1e-5)

    # 4) bf16 MXU operands, f32 accumulation / f32 log-probs out.
    out_bf = generator_forward(x, w, b, compute_dtype=jnp.bfloat16)
    jax.block_until_ready(out_bf)
    ref_bf = jax.nn.log_softmax(
        jnp.einsum(
            "btd,dv->btv",
            x.astype(jnp.bfloat16),
            w.astype(jnp.bfloat16),
            preferred_element_type=jnp.float32,
        )
        + b,
        axis=-1,
    )
    assert jnp.allclose(out_bf, ref_bf, atol=5e-2, rtol=5e-2)

    print("KERNEL_OK")
</pallas_src>

<mosaic_0001>
module attributes {stable_mosaic.version = 11 : i64} {
  func.func @_fused_kernel(%arg0: i32, %arg1: i32, %arg2: memref<16x32xf32, #tpu.memory_space<vmem>>, %arg3: memref<32x128xf32, #tpu.memory_space<vmem>>, %arg4: memref<1x128xf32, #tpu.memory_space<vmem>>, %arg5: memref<16x128xf32, #tpu.memory_space<vmem>>, %arg6: memref<16x1xf32, #tpu.memory_space<vmem>>, %arg7: memref<16x1xf32, #tpu.memory_space<vmem>>) attributes {dimension_semantics = [#tpu.dimension_semantics<parallel>, #tpu.dimension_semantics<arbitrary>], iteration_bounds = array<i64: 1, 1>, scalar_prefetch = 0 : i64, scratch_operands = 2 : i64, tpu.core_type = #tpu.core_type<tc>, window_params = [{transform_indices = @transform_0, window_bounds = array<i64: 16, 32>}, {transform_indices = @transform_1, window_bounds = array<i64: 32, 128>}, {pipeline_mode = #tpu.pipeline_mode<synchronous>, transform_indices = @transform_2, window_bounds = array<i64: 1, 128>}, {transform_indices = @transform_3, window_bounds = array<i64: 16, 128>}]} {
    %c128_i32 = arith.constant 128 : i32
    %0 = arith.muli %arg1, %c128_i32 : i32
    %1 = tpu.assume_multiple %0, 128 : i32
    %c0_i32 = arith.constant 0 : i32
    %2 = arith.cmpi eq, %arg1, %c0_i32 : i32
    %3 = arith.extui %2 : i1 to i32
    %c0_i32_0 = arith.constant 0 : i32
    %4 = arith.cmpi ne, %3, %c0_i32_0 : i32
    scf.if %4 {
      %cst_18 = arith.constant 0xFF800000 : f32
      %33 = vector.broadcast %cst_18 : f32 to vector<16x1xf32>
      %c0_19 = arith.constant 0 : index
      %c0_20 = arith.constant 0 : index
      %34 = vector.load %arg6[%c0_19, %c0_20] : memref<16x1xf32, #tpu.memory_space<vmem>>, vector<16x1xf32>
      tpu.vector_store %arg6[%c0_19, %c0_20], %33 {strides = array<i32>} : memref<16x1xf32, #tpu.memory_space<vmem>>, vector<16x1xf32>,
      %cst_21 = arith.constant 0.000000e+00 : f32
      %35 = vector.broadcast %cst_21 : f32 to vector<16x1xf32>
      %c0_22 = arith.constant 0 : index
      %c0_23 = arith.constant 0 : index
      %36 = vector.load %arg7[%c0_22, %c0_23] : memref<16x1xf32, #tpu.memory_space<vmem>>, vector<16x1xf32>
      tpu.vector_store %arg7[%c0_22, %c0_23], %35 {strides = array<i32>} : memref<16x1xf32, #tpu.memory_space<vmem>>, vector<16x1xf32>,
    } else {
    }
    %c0 = arith.constant 0 : index
    %c0_1 = arith.constant 0 : index
    %5 = vector.load %arg2[%c0, %c0_1] : memref<16x32xf32, #tpu.memory_space<vmem>>, vector<16x32xf32>
    %c0_2 = arith.constant 0 : index
    %c0_3 = arith.constant 0 : index
    %6 = vector.load %arg3[%c0_2, %c0_3] : memref<32x128xf32, #tpu.memory_space<vmem>>, vector<32x128xf32>
    %cst = arith.constant dense<0.000000e+00> : vector<16x128xf32>
    %7 = tpu.matmul %5, %6, %cst {dimension_numbers = #tpu.dot_dimension_numbers<[1], [0], [0], [1], [0, 0, 1, 1], [], []>} : vector<16x32xf32>, vector<32x128xf32>, vector<16x128xf32> -> vector<16x128xf32>
    %c0_4 = arith.constant 0 : index
    %8 = arith.index_cast %1 : i32 to index
    %9 = vector.load %arg4[%c0_4, %8] : memref<1x128xf32, #tpu.memory_space<vmem>>, vector<1x128xf32>
    %10 = vector.broadcast %9 : vector<1x128xf32> to vector<16x128xf32>
    %11 = arith.addf %7, %10 : vector<16x128xf32>
    %c0_5 = arith.constant 0 : index
    %12 = arith.index_cast %1 : i32 to index
    %13 = vector.load %arg5[%c0_5, %12] : memref<16x128xf32, #tpu.memory_space<vmem>>, vector<16x128xf32>
    tpu.vector_store %arg5[%c0_5, %12], %11 {strides = array<i32>} : memref<16x128xf32, #tpu.memory_space<vmem>>, vector<16x128xf32>,
    %c0_6 = arith.constant 0 : index
    %c0_7 = arith.constant 0 : index
    %14 = vector.load %arg6[%c0_6, %c0_7] : memref<16x1xf32, #tpu.memory_space<vmem>>, vector<16x1xf32>
    %cst_8 = arith.constant dense<0xFF800000> : vector<16xf32>
    %15 = vector.multi_reduction <maximumf>, %11, %cst_8 [1] : vector<16x128xf32> to vector<16xf32>
    %16 = vector.shape_cast %15 : vector<16xf32> to vector<16x1xf32>
    %17 = arith.maximumf %14, %16 : vector<16x1xf32>
    %c0_9 = arith.constant 0 : index
    %c0_10 = arith.constant 0 : index
    %18 = vector.load %arg7[%c0_9, %c0_10] : memref<16x1xf32, #tpu.memory_space<vmem>>, vector<16x1xf32>
    %19 = arith.subf %14, %17 : vector<16x1xf32>
    %20 = math.exp %19 : vector<16x1xf32>
    %21 = arith.mulf %18, %20 : vector<16x1xf32>
    %22 = vector.broadcast %17 : vector<16x1xf32> to vector<16x128xf32>
    %23 = arith.subf %11, %22 : vector<16x128xf32>
    %24 = math.exp %23 : vector<16x128xf32>
    %cst_11 = arith.constant dense<0.000000e+00> : vector<16xf32>
    %25 = vector.multi_reduction <add>, %24, %cst_11 [1] : vector<16x128xf32> to vector<16xf32>
    %26 = vector.shape_cast %25 : vector<16xf32> to vector<16x1xf32>
    %27 = arith.addf %21, %26 : vector<16x1xf32>
    %c0_12 = arith.constant 0 : index
    %c0_13 = arith.constant 0 : index
    %28 = vector.load %arg7[%c0_12, %c0_13] : memref<16x1xf32, #tpu.memory_space<vmem>>, vector<16x1xf32>
    tpu.vector_store %arg7[%c0_12, %c0_13], %27 {strides = array<i32>} : memref<16x1xf32, #tpu.memory_space<vmem>>, vector<16x1xf32>,
    %c0_14 = arith.constant 0 : index
    %c0_15 = arith.constant 0 : index
    %29 = vector.load %arg6[%c0_14, %c0_15] : memref<16x1xf32, #tpu.memory_space<vmem>>, vector<16x1xf32>
    tpu.vector_store %arg6[%c0_14, %c0_15], %17 {strides = array<i32>} : memref<16x1xf32, #tpu.memory_space<vmem>>, vector<16x1xf32>,
    %c0_i32_16 = arith.constant 0 : i32
    %30 = arith.cmpi eq, %arg1, %c0_i32_16 : i32
    %31 = arith.extui %30 : i1 to i32
    %c0_i32_17 = arith.constant 0 : i32
    %32 = arith.cmpi ne, %31, %c0_i32_17 : i32
    scf.if %32 {
      %c0_18 = arith.constant 0 : index
      %c0_19 = arith.constant 0 : index
      %33 = vector.load %arg6[%c0_18, %c0_19] : memref<16x1xf32, #tpu.memory_space<vmem>>, vector<16x1xf32>
      %c0_20 = arith.constant 0 : index
      %c0_21 = arith.constant 0 : index
      %34 = vector.load %arg7[%c0_20, %c0_21] : memref<16x1xf32, #tpu.memory_space<vmem>>, vector<16x1xf32>
      %35 = math.log %34 : vector<16x1xf32>
      %36 = arith.addf %33, %35 : vector<16x1xf32>
      %c0_i32_22 = arith.constant 0 : i32
      %c128_i32_23 = arith.constant 128 : i32
      %37 = arith.muli %c0_i32_22, %c128_i32_23 : i32
      %38 = tpu.assume_multiple %37, 128 : i32
      %c0_24 = arith.constant 0 : index
      %39 = arith.index_cast %38 : i32 to index
      %40 = vector.load %arg5[%c0_24, %39] : memref<16x128xf32, #tpu.memory_space<vmem>>, vector<16x128xf32>
      %41 = vector.broadcast %36 : vector<16x1xf32> to vector<16x128xf32>
      %42 = arith.subf %40, %41 : vector<16x128xf32>
      %c0_25 = arith.constant 0 : index
      %43 = arith.index_cast %38 : i32 to index
      %44 = vector.load %arg5[%c0_25, %43] : memref<16x128xf32, #tpu.memory_space<vmem>>, vector<16x128xf32>
      tpu.vector_store %arg5[%c0_25, %43], %42 {strides = array<i32>} : memref<16x128xf32, #tpu.memory_space<vmem>>, vector<16x128xf32>,
      %c1_i32 = arith.constant 1 : i32
    } else {
    }
    return
  }
  func.func @transform_0(%arg0: i32, %arg1: i32) -> (i32, i32) {
    %c0_i32 = arith.constant 0 : i32
    %c0_i32_0 = arith.constant 0 : i32
    return %arg0, %c0_i32 : i32, i32
  }
  func.func @transform_1(%arg0: i32, %arg1: i32) -> (i32, i32) {
    %c0_i32 = arith.constant 0 : i32
    %c0_i32_0 = arith.constant 0 : i32
    return %c0_i32, %arg1 : i32, i32
  }
  func.func @transform_2(%arg0: i32, %arg1: i32) -> (i32, i32) {
    %c0_i32 = arith.constant 0 : i32
    %c0_i32_0 = arith.constant 0 : i32
    %c0_i32_1 = arith.constant 0 : i32
    return %c0_i32, %c0_i32_0 : i32, i32
  }
  func.func @transform_3(%arg0: i32, %arg1: i32) -> (i32, i32) {
    %c0_i32 = arith.constant 0 : i32
    %c0_i32_0 = arith.constant 0 : i32
    return %arg0, %c0_i32 : i32, i32
  }
}

</mosaic_0001>

<llo_original>
// kernel: generator_forward.1
$region0: #{generator_forward.1}
  #allocation0 [shape = 'u32[]', space=smem, size = 0x4, offset = 0x4, fixed_abs, tag = 'smem constant byte address 0x4 - core index']
  #allocation1 [shape = 'u32[144,128]{1,0:T(1,128)}', space=vmem, size = 0x12000, scoped, tag = 'internal scratch']
  #allocation2 [shape = 'f32[16,1]{1,0:T(8,128)}', space=vmem, size = 0x2000, scoped, tag = 'scratch operand']
  #allocation3 [shape = 'f32[16,1]{1,0:T(8,128)}', space=vmem, size = 0x2000, scoped, tag = 'scratch operand']
  %s0 = inlined_call_operand.hbm [shape: f32[16,32], index: 0, kind: input, shape index: {}]
  %s1 = inlined_call_operand.hbm [shape: f32[32,128], index: 1, kind: input, shape index: {}]
  %s2 = inlined_call_operand.vmem [shape: f32[1,128], index: 2, kind: input, shape index: {}]
  %s3 = inlined_call_operand.hbm [shape: f32[16,128], index: 3, kind: output, shape index: {}]
  %s4 = sld [smem:[#allocation0]]
  $region38: #{generator_forward.1} parent=0
    _
  %s6 = ssub.s32 1, %s4
  %s7 = scalar_select 0, %s6, %s4
  $region1: #{generator_forward.1} parent=0
    #allocation4 [shape = 'u8[8192]{0}', space=vmem, size = 0x2000, scoped, tag = 'input window, operand 0, single buffered']
    #allocation5 [shape = 's32[1]{0}', space=sflag, size = 0x4, scoped, tag = 'scoped memory for generator_forward.1']
    #allocation6 [shape = 's32[1]{0}', space=sflag, size = 0x4, scoped, tag = 'scoped memory for generator_forward.1']
    #allocation7 [shape = 'u8[16384]{0}', space=vmem, size = 0x4000, scoped, tag = 'input window, operand 1, single buffered']
    #allocation8 [shape = 's32[1]{0}', space=sflag, size = 0x4, scoped, tag = 'scoped memory for generator_forward.1']
    #allocation9 [shape = 'u8[8192]{0}', space=vmem, size = 0x2000, scoped, tag = 'output window, operand 0, single buffered']
    %8 = vsyncpa [#allocation5], 0
    %9 = vsyncpa [#allocation8], 0
    %10 = vsyncpa [#allocation6], 0
    // Predicated region
    $region2: #{generator_forward.1} parent=1 // pred_check
      _
    $region3: #{generator_forward.1} parent=1 // pred_check_branch
      %12 = sbr.rel (0) target = $region5
    $region4: #{generator_forward.1} parent=1 // pred_region
      %s14 = ssub.s32 256, 256
      %15 = vsyncadd [#allocation5], %s14
      %s16 = sshll.u32 [#allocation4], 4
      %s17 = int_to_ptr.vmem [resolvable:$true] %s16
      %22 = dma.hbm_to_vmem [thread:$0]  %s0, 256, %s17, [#allocation5], 128, 128, 8
    $region5: #{generator_forward.1} parent=1 // pred_fallthru
      _
    // Predicated region
    $region6: #{generator_forward.1} parent=1 // pred_check
      _
    $region7: #{generator_forward.1} parent=1 // pred_check_branch
      %24 = sbr.rel (0) target = $region9
    $region8: #{generator_forward.1} parent=1 // pred_region
      %s26 = ssub.s32 512, 512
      %27 = vsyncadd [#allocation8], %s26
      %s28 = sshll.u32 [#allocation7], 4
      %s29 = int_to_ptr.vmem [resolvable:$true] %s28
      %34 = dma.hbm_to_vmem [thread:$0]  %s1, 512, %s29, [#allocation8], 128, 128, 8
    $region9: #{generator_forward.1} parent=1 // pred_fallthru
      _
    // Predicated region
    $region10: #{generator_forward.1} parent=1 // pred_check
      _
    $region11: #{generator_forward.1} parent=1 // pred_check_branch
      %36 = sbr.rel (0) target = $region13
    $region12: #{generator_forward.1} parent=1 // pred_region
      _
    $region13: #{generator_forward.1} parent=1 // pred_fallthru
      _
    // Predicated region
    $region14: #{generator_forward.1} parent=1 // pred_check
      _
    $region15: #{generator_forward.1} parent=1 // pred_check_branch
      %38 = sbr.rel (0) target = $region17
    $region16: #{generator_forward.1} parent=1 // pred_region
      %39 = dma.done [#allocation5], 256
    $region17: #{generator_forward.1} parent=1 // pred_fallthru
      _
    // Predicated region
    $region18: #{generator_forward.1} parent=1 // pred_check
      _
    $region19: #{generator_forward.1} parent=1 // pred_check_branch
      %41 = sbr.rel (0) target = $region21
    $region20: #{generator_forward.1} parent=1 // pred_region
      %42 = dma.done [#allocation8], 512
    $region21: #{generator_forward.1} parent=1 // pred_fallthru
      _
    %s43 = smul.u32 0, 128
    %p44 = scmp.eq.s32.totalorder 0, 0
    // Predicated region
    $region22: #{generator_forward.1} parent=1 // pred_check
      %p45 = pneg %p44
    $region23: #{generator_forward.1} parent=1 // pred_check_branch
      %47 = sbr.rel (%p45) target = $region25
    $region24: #{generator_forward.1} parent=1 // pred_region
      %vm48 = vcmask 7168
      %49 = vst.msk [vmem:[#allocation2] sm:$0xff] %vm48, -inf
      %50 = vst.msk [vmem:[#allocation2 + $0x8] sm:$0xff] %vm48, -inf
      %51 = vst.msk [vmem:[#allocation3] sm:$0xff] %vm48, 0.0
      %52 = vst.msk [vmem:[#allocation3 + $0x8] sm:$0xff] %vm48, 0.0
    $region25: #{generator_forward.1} parent=1 // pred_fallthru
      _
    %v53 = vld [vmem:[#allocation4] sm:$0xff]
    %v54 = vld [vmem:[#allocation4 + $0x8] sm:$0xff]
    %v55 = vld [vmem:[#allocation7] sm:$0xff]
    %v56 = vld [vmem:[#allocation7 + $0x8] sm:$0xff]
    %v57 = vld [vmem:[#allocation7 + $0x10] sm:$0xff]
    %v58 = vld [vmem:[#allocation7 + $0x18] sm:$0xff]
    %s59 = sshra.s32 %s43, 7
    %s60 = sand.u32 %s43, 127
    %s61 = scalar_lea.vmem %s2, %s59
    %v62 = vld [vmem:[%s61] sm:$0x1]
    %v64 = vlaneseq
    %v65 = vshrl.u32 %v64, 7
    %v66 = vsub.s32 0, %v65
    %v67 = vrot.slane %v62, %v66
    %vm69 = vcmask 261120
    %v71 = vsel %vm69, %v53, 0
    %v74 = vsel %vm69, %v54, 0
    %76 = vmatprep.subr.mxu0 0.0
    %77 = vmatpush1.msra.mxu0 %v55
    %78 = vmatprep.subr.mxu0 0.0
    %79 = vmatpush1.msra.mxu0 %v56
    %80 = vmatprep.subr.mxu0 0.0
    %81 = vmatpush1.msra.mxu0 %v57
    %82 = vmatprep.subr.mxu0 0.0
    %83 = vmatpush1.msra.mxu0 %v58
    %84 = vmatprep.subr.mxu0 0.0
    %85 = vmatpush1.msra.mxu0 0.0
    %86 = vmatprep.subr.mxu0 0.0
    %87 = vmatpush1.msra.mxu0 0.0
    %88 = vmatprep.subr.mxu0 0.0
    %89 = vmatpush1.msra.mxu0 0.0
    %90 = vmatprep.subr.mxu0 0.0
    %91 = vmatpush1.msra.mxu0 0.0
    %92 = vmatprep.subr.mxu0 0.0
    %93 = vmatpush1.msra.mxu0 0.0
    %94 = vmatprep.subr.mxu0 0.0
    %95 = vmatpush1.msra.mxu0 0.0
    %96 = vmatprep.subr.mxu0 0.0
    %97 = vmatpush1.msra.mxu0 0.0
    %98 = vmatprep.subr.mxu0 0.0
    %99 = vmatpush1.msra.mxu0 0.0
    %100 = vmatprep.subr.mxu0 0.0
    %101 = vmatpush1.msra.mxu0 0.0
    %102 = vmatprep.subr.mxu0 0.0
    %103 = vmatpush1.msra.mxu0 0.0
    %104 = vmatprep.subr.mxu0 0.0
    %105 = vmatpush1.msra.mxu0 0.0
    %106 = vmatprep.subr.mxu0 0.0
    %107 = vmatpush1.msra.mxu0 0.0
    %108 = vmatprep.subr.mxu0 0.0
    %109 = vmatpush1.msra.mxu0 0.0
    %110 = vmatprep.subr.mxu0 0.0
    %111 = vmatpush1.msra.mxu0 0.0
    %112 = vmatprep.subr.mxu0 0.0
    %113 = vmatpush1.msra.mxu0 0.0
    %114 = vmatprep.subr.mxu0 0.0
    %115 = vmatpush1.msra.mxu0 0.0
    %116 = vmatprep.subr.mxu0 0.0
    %117 = vmatpush1.msra.mxu0 0.0
    %118 = vmatprep.subr.mxu0 0.0
    %119 = vmatpush1.msra.mxu0 0.0
    %120 = vmatprep.subr.mxu0 0.0
    %121 = vmatpush1.msra.mxu0 0.0
    %122 = vmatprep.subr.mxu0 0.0
    %123 = vmatpush1.msra.mxu0 0.0
    %124 = vmatprep.subr.mxu0 0.0
    %125 = vmatpush1.msra.mxu0 0.0
    %126 = vmatprep.subr.mxu0 0.0
    %127 = vmatpush1.msra.mxu0 0.0
    %128 = vmatprep.subr.mxu0 0.0
    %129 = vmatpush1.msra.mxu0 0.0
    %130 = vmatprep.subr.mxu0 0.0
    %131 = vmatpush1.msra.mxu0 0.0
    %132 = vmatprep.subr.mxu0 0.0
    %133 = vmatpush1.msra.mxu0 0.0
    %134 = vmatprep.subr.mxu0 0.0
    %135 = vmatpush1.msra.mxu0 0.0
    %136 = vmatprep.subr.mxu0 0.0
    %137 = vmatpush1.msra.mxu0 0.0
    %138 = vmatprep.subr.mxu0 0.0
    %139 = vmatpush1.msra.mxu0 0.0
    %140 = vmatprep.mubr.f32.mxu0 0.0
    %141 = vmatmul.mubr.f32.gmra.mrb[0].mxu0 %v71
    %v142 = vpop.f32.mrb[0].mxu0
    %v143 = vadd.f32 %v67, %v142
    %v144 = vpop.f32.mrb[0].mxu0
    %145 = vmatprep.mubr.f32.mxu0 0.0
    %146 = vmatmul.mubr.f32.gmra.mrb[0].mxu0 %v74
    %v147 = vpop.f32.mrb[0].mxu0
    %v148 = vadd.f32 %v67, %v147
    %v149 = vpop.f32.mrb[0].mxu0
    %150 = vdwg.mxu0
    %s151 = scalar_lea.vmem [#allocation9], %s59
    %152 = vst [vmem:[%s151] sm:$0xff] %v143
    %153 = vst [vmem:[%s151 + $0x8] sm:$0xff] %v148
    %v154 = vld [vmem:[#allocation2] sm:$0xff]
    %v155 = vld [vmem:[#allocation2 + $0x8] sm:$0xff]
    %156 = vmax.xlane.f32.xlu0 %v143
    %v157 = vpop.xlane.xlu0 %156
    %158 = vmax.xlane.f32.xlu0 %v148
    %v159 = vpop.xlane.xlu0 %158
    %v160 = vmax.f32 %v154, %v157
    %v161 = vmax.f32 %v155, %v159
    %v162 = vld [vmem:[#allocation3] sm:$0xff]
    %v163 = vld [vmem:[#allocation3 + $0x8] sm:$0xff]
    %v164 = vsub.f32 %v154, %v160
    %v165 = vsub.f32 %v155, %v161
    %v166 = vmul.f32 %v164, 1.442695
    %v167 = vpow.pop %v166
    %v168 = vmul.f32 %v165, 1.442695
    %v169 = vpow.pop %v168
    %v170 = vmul.f32 %v162, %v167
    %v171 = vmul.f32 %v163, %v169
    %173 = vset.pattern.permute.xlu0 0
    %174 = vperm.xlu0 %173, %v160
    %v175 = vpop.permute.xlu0 %174
    %178 = vset.pattern.permute.xlu0 0
    %179 = vperm.xlu0 %178, %v161
    %v180 = vpop.permute.xlu0 %179
    %v182 = vsub.f32 %v143, %v175
    %v183 = vsub.f32 %v148, %v180
    %v184 = vmul.f32 %v182, 1.442695
    %v185 = vpow.pop %v184
    %v186 = vmul.f32 %v183, 1.442695
    %v187 = vpow.pop %v186
    %188 = vadd.xlane.f32.xlu0 %v185
    %v189 = vpop.xlane.xlu0 %188
    %190 = vadd.xlane.f32.xlu0 %v187
    %v191 = vpop.xlane.xlu0 %190
    %v192 = vadd.f32 %v170, %v189
    %v193 = vadd.f32 %v171, %v191
    %vm194 = vcmask 7168
    %195 = vst.msk [vmem:[#allocation3] sm:$0xff] %vm194, %v192
    %196 = vst.msk [vmem:[#allocation3 + $0x8] sm:$0xff] %vm194, %v193
    %197 = vst.msk [vmem:[#allocation2] sm:$0xff] %vm194, %v160
    %198 = vst.msk [vmem:[#allocation2 + $0x8] sm:$0xff] %vm194, %v161
    // Predicated region
    $region26: #{generator_forward.1} parent=1 // pred_check
      %p199 = pneg %p44
    $region27: #{generator_forward.1} parent=1 // pred_check_branch
      %201 = sbr.rel (%p199) target = $region29
    $region28: #{generator_forward.1} parent=1 // pred_region
      %v202 = vld [vmem:[#allocation2] sm:$0xff]
      %v203 = vld [vmem:[#allocation2 + $0x8] sm:$0xff]
      %v204 = vld [vmem:[#allocation3] sm:$0xff]
      %v205 = vld [vmem:[#allocation3 + $0x8] sm:$0xff]
      %v206 = vlog2.pop %v204
      %v207 = vmul.f32 %v206, 0.6931472
      %v208 = vlog2.pop %v205
      %v209 = vmul.f32 %v208, 0.6931472
      %v210 = vadd.f32 %v202, %v207
      %v211 = vadd.f32 %v203, %v209
      %v212 = vld [vmem:[#allocation9] sm:$0xff]
      %v213 = vld [vmem:[#allocation9 + $0x8] sm:$0xff]
      %215 = vset.pattern.permute.xlu0 0
      %216 = vperm.xlu0 %215, %v210
      %v217 = vpop.permute.xlu0 %216
      %220 = vset.pattern.permute.xlu0 0
      %221 = vperm.xlu0 %220, %v211
      %v222 = vpop.permute.xlu0 %221
      %v224 = vsub.f32 %v212, %v217
      %v225 = vsub.f32 %v213, %v222
      %226 = vst [vmem:[#allocation9] sm:$0xff] %v224
      %227 = vst [vmem:[#allocation9 + $0x8] sm:$0xff] %v225
    $region29: #{generator_forward.1} parent=1 // pred_fallthru
      _
    // Predicated region
    $region30: #{generator_forward.1} parent=1 // pred_check
      _
    $region31: #{generator_forward.1} parent=1 // pred_check_branch
      %229 = sbr.rel (0) target = $region33
    $region32: #{generator_forward.1} parent=1 // pred_region
      %s231 = ssub.s32 256, 256
      %232 = vsyncadd [#allocation6], %s231
      %s233 = sshll.u32 [#allocation9], 4
      %s234 = int_to_ptr.vmem [resolvable:$true] %s233
      %239 = dma.vmem_to_hbm [thread:$0]  %s234, 256, %s3, [#allocation6], 128, 128, 8
    $region33: #{generator_forward.1} parent=1 // pred_fallthru
      _
    // Predicated region
    $region34: #{generator_forward.1} parent=1 // pred_check
      _
    $region35: #{generator_forward.1} parent=1 // pred_check_branch
      %241 = sbr.rel (0) target = $region37
    $region36: #{generator_forward.1} parent=1 // pred_region
      %242 = dma.done [#allocation6], 256
    $region37: #{generator_forward.1} parent=1 // pred_fallthru
      _
    %243 = vsyncpa [#allocation5], 1
    %244 = vsyncpa [#allocation8], 1
    %245 = vsyncpa [#allocation6], 1

</llo_original>
